<compile_context>
chip_gen: v7x
topology: tpu7x:2x2x1
jax: 0.10.0
libtpu: 0.0.40
codegen_flags: <defaults>
</compile_context>

<pallas_src>
import jax
import jax.numpy as jnp
from jax.experimental import pallas as pl
from jax.experimental.pallas import tpu as pltpu


# ----------------------------------------------------------------------------
# Shared cell math (traced inside both kernels).
# ----------------------------------------------------------------------------
def _gru_cell(h, x, w1, b1, w2):
    """One GRU_black step.

    h, x        : (B, D)  float32
    w1          : (2D, 3D) fused [[W_h_r^T, W_h_z^T, 0], [W_x_r^T, W_x_z^T, W_x_h^T]]
    b1          : (1, 3D)  fused [b_r | b_z | b_h]
    w2          : (D, D)   W_h_h^T
    returns (h_t, h_tile), both (B, D) float32.
    """
    D = h.shape[1]
    hx = jnp.concatenate([h, x], axis=1)                              # (B, 2D)
    pre = jnp.dot(hx, w1, preferred_element_type=jnp.float32) + b1    # (B, 3D)
    rz = jax.nn.sigmoid(pre[:, : 2 * D])                              # (B, 2D)
    r_t = rz[:, :D]
    z_t = rz[:, D:]
    # candidate: tanh(x@W_x_h^T + b_h + (r*h)@W_h_h^T); x-term + b_h already in pre.
    h_tile = jnp.tanh(
        pre[:, 2 * D :]
        + jnp.dot(r_t * h, w2, preferred_element_type=jnp.float32)
    )                                                                 # (B, D)
    # H_t = z*h + (1-z)*h_tile  ==  h_tile + z*(h - h_tile)
    h_t = h_tile + z_t * (h - h_tile)
    return h_t, h_tile


# ----------------------------------------------------------------------------
# Single-step kernel: mirrors GRU_black.forward exactly.
# ----------------------------------------------------------------------------
def gru_black_step_kernel(h_ref, x_ref, w1_ref, b1_ref, w2_ref, ht_ref, htile_ref):
    h_t, h_tile = _gru_cell(
        h_ref[...], x_ref[...], w1_ref[...], b1_ref[...], w2_ref[...]
    )
    ht_ref[...] = h_t.astype(ht_ref.dtype)
    htile_ref[...] = h_tile.astype(htile_ref.dtype)


@jax.jit
def gru_black_forward(global_embedding, curr_behavior_embedding, prepared):
    """Single cell step (original module semantics). Returns (H_t, H_tile)."""
    B, D = global_embedding.shape
    full = lambda shape: pl.BlockSpec(shape, lambda: (0,) * len(shape))

    h_t, h_tile = pl.pallas_call(
        gru_black_step_kernel,
        out_shape=(
            jax.ShapeDtypeStruct((B, D), jnp.float32),
            jax.ShapeDtypeStruct((B, D), jnp.float32),
        ),
        grid=(),
        in_specs=[
            full((B, D)),            # h  (global_embedding)
            full((B, D)),            # x  (curr_behavior_embedding)
            full((2 * D, 3 * D)),    # w1
            full((1, 3 * D)),        # b1
            full((D, D)),            # w2
        ],
        out_specs=(full((B, D)), full((B, D))),
    )(
        global_embedding,
        curr_behavior_embedding,
        prepared["w1"],
        prepared["b1"],
        prepared["w2"],
    )
    return h_t, h_tile


# ----------------------------------------------------------------------------
# Sequence-looped kernel: time inside one pallas_call, weights VMEM-resident,
# hidden state carried in VMEM scratch.
# ----------------------------------------------------------------------------
def gru_black_seq_kernel(
    h0_ref,      # (B, D)  initial global_embedding (constant index_map)
    x_ref,       # (B, D)  x_t slice for this step   (streamed)
    w1_ref,      # (2D, 3D) fused weights            (constant -> VMEM resident)
    b1_ref,      # (1, 3D)  fused bias               (constant)
    w2_ref,      # (D, D)   W_h_h^T                  (constant)
    ht_ref,      # (B, D)   H_t  output for this step
    htile_ref,   # (B, D)   H_tile output for this step
    h_scr,       # (B, D)   f32 VMEM scratch carrying the hidden state
):
    t = pl.program_id(0)

    @pl.when(t == 0)
    def _():
        h_scr[...] = h0_ref[...]

    h_t, h_tile = _gru_cell(
        h_scr[...], x_ref[...], w1_ref[...], b1_ref[...], w2_ref[...]
    )
    h_scr[...] = h_t
    ht_ref[...] = h_t.astype(ht_ref.dtype)
    htile_ref[...] = h_tile.astype(htile_ref.dtype)


@jax.jit
def gru_black_forward_seq(global_embedding, x_seq, prepared):
    """Applies the cell over x_seq (T, B, D), carrying H_t forward.

    Returns (H_t_seq, H_tile_seq), both (T, B, D); H_t_seq[-1] is the final state.
    """
    T, B, D = x_seq.shape
    const = lambda shape: pl.BlockSpec(shape, lambda t: (0,) * len(shape))
    step = pl.BlockSpec((None, B, D), lambda t: (t, 0, 0))

    ht_seq, htile_seq = pl.pallas_call(
        gru_black_seq_kernel,
        out_shape=(
            jax.ShapeDtypeStruct((T, B, D), jnp.float32),
            jax.ShapeDtypeStruct((T, B, D), jnp.float32),
        ),
        grid=(T,),
        in_specs=[
            const((B, D)),           # h0
            step,                    # x_t
            const((2 * D, 3 * D)),   # w1 (DMA'd once, stays in VMEM)
            const((1, 3 * D)),       # b1
            const((D, D)),           # w2
        ],
        out_specs=(step, step),
        scratch_shapes=[pltpu.VMEM((B, D), jnp.float32)],
        compiler_params=pltpu.CompilerParams(
            dimension_semantics=("arbitrary",),   # time carries state -> sequential
        ),
    )(
        global_embedding,
        x_seq,
        prepared["w1"],
        prepared["b1"],
        prepared["w2"],
    )
    return ht_seq, htile_seq


# ----------------------------------------------------------------------------
# One-time weight packing (hoisted out of the per-call path).
# ----------------------------------------------------------------------------
def prepare_gru_params(params):
    """Pack PyTorch-convention weights into fused kernel operands (call once)."""
    D = params["W_h_r"].shape[0]
    zeros = jnp.zeros((D, D), jnp.float32)
    # torch.Linear computes y = x @ W.T, so transpose each (D, D) weight.
    top = jnp.concatenate(
        [params["W_h_r"].T, params["W_h_z"].T, zeros], axis=1
    )  # (D, 3D)  -- multiplies h
    bot = jnp.concatenate(
        [params["W_x_r"].T, params["W_x_z"].T, params["W_x_h"].T], axis=1
    )  # (D, 3D)  -- multiplies x
    w1 = jnp.concatenate([top, bot], axis=0)  # (2D, 3D)
    b1 = jnp.concatenate([params["b_r"], params["b_z"], params["b_h"]], axis=1)  # (1, 3D)
    w2 = params["W_h_h"].T  # (D, D)
    return {"w1": w1, "b1": b1, "w2": w2}


# ----------------------------------------------------------------------------
# Init + pure-JAX reference (mirrors the PyTorch module).
# ----------------------------------------------------------------------------
def xavier_normal(key, shape):
    fan_in, fan_out = shape[1], shape[0]
    std = (2.0 / (fan_in + fan_out)) ** 0.5
    return std * jax.random.normal(key, shape, dtype=jnp.float32)


def init_params(key, embedd_dim):
    ks = jax.random.split(key, 9)
    D = embedd_dim
    lin = lambda k: jax.random.uniform(
        k, (D, D), dtype=jnp.float32, minval=-1.0 / D**0.5, maxval=1.0 / D**0.5
    )
    return {
        "W_x_r": lin(ks[0]),
        "W_h_r": lin(ks[1]),
        "b_r": xavier_normal(ks[2], (1, D)),
        "W_x_z": lin(ks[3]),
        "W_h_z": lin(ks[4]),
        "b_z": xavier_normal(ks[5], (1, D)),
        "W_x_h": lin(ks[6]),
        "W_h_h": lin(ks[7]),
        "b_h": xavier_normal(ks[8], (1, D)),
    }


def reference_forward(h, x, p):
    lin = lambda v, w: v @ w.T
    r_t = jax.nn.sigmoid(lin(h, p["W_h_r"]) + lin(x, p["W_x_r"]) + p["b_r"])
    z_t = jax.nn.sigmoid(lin(h, p["W_h_z"]) + lin(x, p["W_x_z"]) + p["b_z"])
    h_tile = jnp.tanh(lin(x, p["W_x_h"]) + lin(r_t * h, p["W_h_h"]) + p["b_h"])
    h_t = z_t * h + (1.0 - z_t) * h_tile
    return h_t, h_tile


if __name__ == "__main__":
    embedd_dim = 64
    batch = 8
    seq_len = 16

    key = jax.random.PRNGKey(0)
    k_params, k_h, k_x, k_seq = jax.random.split(key, 4)

    params = init_params(k_params, embedd_dim)
    prepared = jax.tree_util.tree_map(
        jax.block_until_ready, prepare_gru_params(params)
    )

    global_embedding = jax.random.normal(k_h, (batch, embedd_dim), dtype=jnp.float32)
    curr_behavior_embedding = jax.random.normal(
        k_x, (batch, embedd_dim), dtype=jnp.float32
    )

    # --- Single step (original module forward) -----------------------------
    h_t, h_tile = gru_black_forward(
        global_embedding, curr_behavior_embedding, prepared
    )
    jax.block_until_ready((h_t, h_tile))

    h_t_ref, h_tile_ref = reference_forward(
        global_embedding, curr_behavior_embedding, params
    )
    assert jnp.allclose(h_t, h_t_ref, atol=1e-4, rtol=1e-4)
    assert jnp.allclose(h_tile, h_tile_ref, atol=1e-4, rtol=1e-4)

    # --- Sequence-looped version (weights VMEM-resident over T steps) ------
    x_seq = jax.random.normal(
        k_seq, (seq_len, batch, embedd_dim), dtype=jnp.float32
    )
    ht_seq, htile_seq = gru_black_forward_seq(global_embedding, x_seq, prepared)
    jax.block_until_ready((ht_seq, htile_seq))

    h_ref = global_embedding
    for t in range(seq_len):
        h_ref, htile_ref_t = reference_forward(h_ref, x_seq[t], params)
        assert jnp.allclose(ht_seq[t], h_ref, atol=1e-3, rtol=1e-3)
        assert jnp.allclose(htile_seq[t], htile_ref_t, atol=1e-3, rtol=1e-3)

    print("KERNEL_OK")
</pallas_src>

<mosaic_0001>
module attributes {stable_mosaic.version = 11 : i64} {
  func.func @gru_black_step_kernel(%arg0: memref<8x64xf32, #tpu.memory_space<vmem>>, %arg1: memref<8x64xf32, #tpu.memory_space<vmem>>, %arg2: memref<128x192xf32, #tpu.memory_space<vmem>>, %arg3: memref<1x192xf32, #tpu.memory_space<vmem>>, %arg4: memref<64x64xf32, #tpu.memory_space<vmem>>, %arg5: memref<8x64xf32, #tpu.memory_space<vmem>>, %arg6: memref<8x64xf32, #tpu.memory_space<vmem>>) attributes {dimension_semantics = [], scalar_prefetch = 0 : i64, scratch_operands = 0 : i64, tpu.core_type = #tpu.core_type<tc>} {
    %c0 = arith.constant 0 : index
    %c0_0 = arith.constant 0 : index
    %0 = vector.load %arg0[%c0, %c0_0] : memref<8x64xf32, #tpu.memory_space<vmem>>, vector<8x64xf32>
    %c0_1 = arith.constant 0 : index
    %c0_2 = arith.constant 0 : index
    %1 = vector.load %arg1[%c0_1, %c0_2] : memref<8x64xf32, #tpu.memory_space<vmem>>, vector<8x64xf32>
    %c0_3 = arith.constant 0 : index
    %c0_4 = arith.constant 0 : index
    %2 = vector.load %arg2[%c0_3, %c0_4] : memref<128x192xf32, #tpu.memory_space<vmem>>, vector<128x192xf32>
    %c0_5 = arith.constant 0 : index
    %c0_6 = arith.constant 0 : index
    %3 = vector.load %arg3[%c0_5, %c0_6] : memref<1x192xf32, #tpu.memory_space<vmem>>, vector<1x192xf32>
    %c0_7 = arith.constant 0 : index
    %c0_8 = arith.constant 0 : index
    %4 = vector.load %arg4[%c0_7, %c0_8] : memref<64x64xf32, #tpu.memory_space<vmem>>, vector<64x64xf32>
    %5 = tpu.concatenate %0, %1 in 1 : vector<8x64xf32>, vector<8x64xf32> -> vector<8x128xf32>
    %cst = arith.constant dense<0.000000e+00> : vector<8x192xf32>
    %6 = tpu.matmul %5, %2, %cst {dimension_numbers = #tpu.dot_dimension_numbers<[1], [0], [0], [1], [0, 0, 1, 1], [], []>} : vector<8x128xf32>, vector<128x192xf32>, vector<8x192xf32> -> vector<8x192xf32>
    %7 = vector.broadcast %3 : vector<1x192xf32> to vector<8x192xf32>
    %8 = arith.addf %6, %7 : vector<8x192xf32>
    %9 = vector.extract_strided_slice %8 {offsets = [0, 0], sizes = [8, 128], strides = [1, 1]} : vector<8x192xf32> to vector<8x128xf32>
    %10 = arith.negf %9 : vector<8x128xf32>
    %11 = math.exp %10 : vector<8x128xf32>
    %cst_9 = arith.constant 1.000000e+00 : f32
    %12 = vector.broadcast %cst_9 : f32 to vector<8x128xf32>
    %13 = arith.addf %12, %11 : vector<8x128xf32>
    %14 = arith.divf %12, %13 : vector<8x128xf32>
    %15 = vector.extract_strided_slice %14 {offsets = [0, 0], sizes = [8, 64], strides = [1, 1]} : vector<8x128xf32> to vector<8x64xf32>
    %16 = vector.extract_strided_slice %14 {offsets = [0, 64], sizes = [8, 64], strides = [1, 1]} : vector<8x128xf32> to vector<8x64xf32>
    %17 = vector.extract_strided_slice %8 {offsets = [0, 128], sizes = [8, 64], strides = [1, 1]} : vector<8x192xf32> to vector<8x64xf32>
    %18 = arith.mulf %15, %0 : vector<8x64xf32>
    %cst_10 = arith.constant dense<0.000000e+00> : vector<8x64xf32>
    %19 = tpu.matmul %18, %4, %cst_10 {dimension_numbers = #tpu.dot_dimension_numbers<[1], [0], [0], [1], [0, 0, 1, 1], [], []>} : vector<8x64xf32>, vector<64x64xf32>, vector<8x64xf32> -> vector<8x64xf32>
    %20 = arith.addf %17, %19 : vector<8x64xf32>
    %21 = math.tanh %20 : vector<8x64xf32>
    %22 = arith.subf %0, %21 : vector<8x64xf32>
    %23 = arith.mulf %16, %22 : vector<8x64xf32>
    %24 = arith.addf %21, %23 : vector<8x64xf32>
    %c0_11 = arith.constant 0 : index
    %c0_12 = arith.constant 0 : index
    %25 = vector.load %arg5[%c0_11, %c0_12] : memref<8x64xf32, #tpu.memory_space<vmem>>, vector<8x64xf32>
    tpu.vector_store %arg5[%c0_11, %c0_12], %24 {strides = array<i32>} : memref<8x64xf32, #tpu.memory_space<vmem>>, vector<8x64xf32>,
    %c0_13 = arith.constant 0 : index
    %c0_14 = arith.constant 0 : index
    %26 = vector.load %arg6[%c0_13, %c0_14] : memref<8x64xf32, #tpu.memory_space<vmem>>, vector<8x64xf32>
    tpu.vector_store %arg6[%c0_13, %c0_14], %21 {strides = array<i32>} : memref<8x64xf32, #tpu.memory_space<vmem>>, vector<8x64xf32>,
    return
  }
}

</mosaic_0001>

<llo_original>
// kernel: gru_black_forward.1
$region0: #{gru_black_forward.1}
  #allocation0 [shape = 'u32[]', space=smem, size = 0x4, offset = 0x4, fixed_abs, tag = 'smem constant byte address 0x4 - core index']
  #allocation1 [shape = 'u32[144,128]{1,0:T(1,128)}', space=vmem, size = 0x12000, scoped, tag = 'internal scratch']
  %s0 = inlined_call_operand.vmem [shape: f32[8,64], index: 0, kind: input, shape index: {}]
  %s1 = inlined_call_operand.vmem [shape: f32[8,64], index: 1, kind: input, shape index: {}]
  %s2 = inlined_call_operand.vmem [shape: f32[128,192], index: 2, kind: input, shape index: {}]
  %s3 = inlined_call_operand.vmem [shape: f32[1,192], index: 3, kind: input, shape index: {}]
  %s4 = inlined_call_operand.vmem [shape: f32[64,64], index: 4, kind: input, shape index: {}]
  %s5 = inlined_call_operand.hbm [shape: f32[8,64], index: 5, kind: output, shape index: {0}]
  %s6 = inlined_call_operand.hbm [shape: f32[8,64], index: 6, kind: output, shape index: {1}]
  %7 = xla_tuple %s5, %s6
  %s8 = sld [smem:[#allocation0]]
  $region38: #{gru_black_forward.1} parent=0
    _
  %s10 = ssub.s32 1, %s8
  %s11 = scalar_select 0, %s10, %s8
  $region1: #{gru_black_forward.1} parent=0
    #allocation2 [shape = 'u8[4096]{0}', space=vmem, size = 0x1000, scoped, tag = 'output window, operand 0, single buffered']
    #allocation3 [shape = 's32[1]{0}', space=sflag, size = 0x4, scoped, tag = 'scoped memory for gru_black_forward.1']
    #allocation4 [shape = 'u8[4096]{0}', space=vmem, size = 0x1000, scoped, tag = 'output window, operand 1, single buffered']
    #allocation5 [shape = 's32[1]{0}', space=sflag, size = 0x4, scoped, tag = 'scoped memory for gru_black_forward.1']
    %12 = vsyncpa [#allocation3], 0
    %13 = vsyncpa [#allocation5], 0
    // Predicated region
    $region2: #{gru_black_forward.1} parent=1 // pred_check
      _
    $region3: #{gru_black_forward.1} parent=1 // pred_check_branch
      %15 = sbr.rel (0) target = $region5
    $region4: #{gru_black_forward.1} parent=1 // pred_region
      _
    $region5: #{gru_black_forward.1} parent=1 // pred_fallthru
      _
    // Predicated region
    $region6: #{gru_black_forward.1} parent=1 // pred_check
      _
    $region7: #{gru_black_forward.1} parent=1 // pred_check_branch
      %17 = sbr.rel (0) target = $region9
    $region8: #{gru_black_forward.1} parent=1 // pred_region
      _
    $region9: #{gru_black_forward.1} parent=1 // pred_fallthru
      _
    // Predicated region
    $region10: #{gru_black_forward.1} parent=1 // pred_check
      _
    $region11: #{gru_black_forward.1} parent=1 // pred_check_branch
      %19 = sbr.rel (0) target = $region13
    $region12: #{gru_black_forward.1} parent=1 // pred_region
      _
    $region13: #{gru_black_forward.1} parent=1 // pred_fallthru
      _
    // Predicated region
    $region14: #{gru_black_forward.1} parent=1 // pred_check
      _
    $region15: #{gru_black_forward.1} parent=1 // pred_check_branch
      %21 = sbr.rel (0) target = $region17
    $region16: #{gru_black_forward.1} parent=1 // pred_region
      _
    $region17: #{gru_black_forward.1} parent=1 // pred_fallthru
      _
    // Predicated region
    $region18: #{gru_black_forward.1} parent=1 // pred_check
      _
    $region19: #{gru_black_forward.1} parent=1 // pred_check_branch
      %23 = sbr.rel (0) target = $region21
    $region20: #{gru_black_forward.1} parent=1 // pred_region
      _
    $region21: #{gru_black_forward.1} parent=1 // pred_fallthru
      _
    %v24 = vld [vmem:[%s0] sm:$0xff]
    %v25 = vld [vmem:[%s1] sm:$0xff]
    %v26 = vld [vmem:[%s2] sm:$0xff]
    %v27 = vld [vmem:[%s2 + $0x8] sm:$0xff]
    %v28 = vld [vmem:[%s2 + $0x10] sm:$0xff]
    %v29 = vld [vmem:[%s2 + $0x18] sm:$0xff]
    %v30 = vld [vmem:[%s2 + $0x20] sm:$0xff]
    %v31 = vld [vmem:[%s2 + $0x28] sm:$0xff]
    %v32 = vld [vmem:[%s2 + $0x30] sm:$0xff]
    %v33 = vld [vmem:[%s2 + $0x38] sm:$0xff]
    %v34 = vld [vmem:[%s2 + $0x40] sm:$0xff]
    %v35 = vld [vmem:[%s2 + $0x48] sm:$0xff]
    %v36 = vld [vmem:[%s2 + $0x50] sm:$0xff]
    %v37 = vld [vmem:[%s2 + $0x58] sm:$0xff]
    %v38 = vld [vmem:[%s2 + $0x60] sm:$0xff]
    %v39 = vld [vmem:[%s2 + $0x68] sm:$0xff]
    %v40 = vld [vmem:[%s2 + $0x70] sm:$0xff]
    %v41 = vld [vmem:[%s2 + $0x78] sm:$0xff]
    %v42 = vld [vmem:[%s2 + $0x80] sm:$0xff]
    %v43 = vld [vmem:[%s2 + $0x88] sm:$0xff]
    %v44 = vld [vmem:[%s2 + $0x90] sm:$0xff]
    %v45 = vld [vmem:[%s2 + $0x98] sm:$0xff]
    %v46 = vld [vmem:[%s2 + $0xa0] sm:$0xff]
    %v47 = vld [vmem:[%s2 + $0xa8] sm:$0xff]
    %v48 = vld [vmem:[%s2 + $0xb0] sm:$0xff]
    %v49 = vld [vmem:[%s2 + $0xb8] sm:$0xff]
    %v50 = vld [vmem:[%s2 + $0xc0] sm:$0xff]
    %v51 = vld [vmem:[%s2 + $0xc8] sm:$0xff]
    %v52 = vld [vmem:[%s2 + $0xd0] sm:$0xff]
    %v53 = vld [vmem:[%s2 + $0xd8] sm:$0xff]
    %v54 = vld [vmem:[%s2 + $0xe0] sm:$0xff]
    %v55 = vld [vmem:[%s2 + $0xe8] sm:$0xff]
    %v56 = vld [vmem:[%s2 + $0xf0] sm:$0xff]
    %v57 = vld [vmem:[%s2 + $0xf8] sm:$0xff]
    %v58 = vld [vmem:[%s3] sm:$0x3]
    %v59 = vld [vmem:[%s4] sm:$0xff]
    %v60 = vld [vmem:[%s4 + $0x8] sm:$0xff]
    %v61 = vld [vmem:[%s4 + $0x10] sm:$0xff]
    %v62 = vld [vmem:[%s4 + $0x18] sm:$0xff]
    %v63 = vld [vmem:[%s4 + $0x20] sm:$0xff]
    %v64 = vld [vmem:[%s4 + $0x28] sm:$0xff]
    %v65 = vld [vmem:[%s4 + $0x30] sm:$0xff]
    %v66 = vld [vmem:[%s4 + $0x38] sm:$0xff]
    %68 = vrot.lane.b32.xlu0 %v25, 64
    %v69 = vpop.permute.xlu0 %68
    %vm71 = vcmask 523264
    %v72 = vsel %vm71, %v24, %v69
    %v74 = vlaneseq
    %v75 = vshrl.u32 %v74, 7
    %v76 = vsub.s32 0, %v75
    %v77 = vrot.slane %v58, %v76
    %v78 = vlaneseq
    %v79 = vshrl.u32 %v78, 7
    %v80 = vsub.s32 1, %v79
    %v81 = vrot.slane %v58, %v80
    %84 = vmatprep.subr.mxu0 %v27
    %85 = vmatpush1.msra.mxu0 %v26
    %86 = vmatprep.subr.mxu0 %v29
    %87 = vmatpush1.msra.mxu0 %v28
    %88 = vmatprep.subr.mxu0 %v31
    %89 = vmatpush1.msra.mxu0 %v30
    %90 = vmatprep.subr.mxu0 %v33
    %91 = vmatpush1.msra.mxu0 %v32
    %92 = vmatprep.subr.mxu0 %v35
    %93 = vmatpush1.msra.mxu0 %v34
    %94 = vmatprep.subr.mxu0 %v37
    %95 = vmatpush1.msra.mxu0 %v36
    %96 = vmatprep.subr.mxu0 %v39
    %97 = vmatpush1.msra.mxu0 %v38
    %98 = vmatprep.subr.mxu0 %v41
    %99 = vmatpush1.msra.mxu0 %v40
    %100 = vmatprep.subr.mxu0 %v43
    %101 = vmatpush1.msra.mxu0 %v42
    %102 = vmatprep.subr.mxu0 %v45
    %103 = vmatpush1.msra.mxu0 %v44
    %104 = vmatprep.subr.mxu0 %v47
    %105 = vmatpush1.msra.mxu0 %v46
    %106 = vmatprep.subr.mxu0 %v49
    %107 = vmatpush1.msra.mxu0 %v48
    %108 = vmatprep.subr.mxu0 %v51
    %109 = vmatpush1.msra.mxu0 %v50
    %110 = vmatprep.subr.mxu0 %v53
    %111 = vmatpush1.msra.mxu0 %v52
    %112 = vmatprep.subr.mxu0 %v55
    %113 = vmatpush1.msra.mxu0 %v54
    %114 = vmatprep.subr.mxu0 %v57
    %115 = vmatpush1.msra.mxu0 %v56
    %116 = vmatprep.subr.mxu0 0.0
    %117 = vmatpush1.msra.mxu0 0.0
    %118 = vmatprep.subr.mxu0 0.0
    %119 = vmatpush1.msra.mxu0 0.0
    %120 = vmatprep.subr.mxu0 0.0
    %121 = vmatpush1.msra.mxu0 0.0
    %122 = vmatprep.subr.mxu0 0.0
    %123 = vmatpush1.msra.mxu0 0.0
    %124 = vmatprep.subr.mxu0 0.0
    %125 = vmatpush1.msra.mxu0 0.0
    %126 = vmatprep.subr.mxu0 0.0
    %127 = vmatpush1.msra.mxu0 0.0
    %128 = vmatprep.subr.mxu0 0.0
    %129 = vmatpush1.msra.mxu0 0.0
    %130 = vmatprep.subr.mxu0 0.0
    %131 = vmatpush1.msra.mxu0 0.0
    %132 = vmatprep.subr.mxu0 0.0
    %133 = vmatpush1.msra.mxu0 0.0
    %134 = vmatprep.subr.mxu0 0.0
    %135 = vmatpush1.msra.mxu0 0.0
    %136 = vmatprep.subr.mxu0 0.0
    %137 = vmatpush1.msra.mxu0 0.0
    %138 = vmatprep.subr.mxu0 0.0
    %139 = vmatpush1.msra.mxu0 0.0
    %140 = vmatprep.subr.mxu0 0.0
    %141 = vmatpush1.msra.mxu0 0.0
    %142 = vmatprep.subr.mxu0 0.0
    %143 = vmatpush1.msra.mxu0 0.0
    %144 = vmatprep.subr.mxu0 0.0
    %145 = vmatpush1.msra.mxu0 0.0
    %146 = vmatprep.subr.mxu0 0.0
    %147 = vmatpush1.msra.mxu0 0.0
    %148 = vmatprep.mubr.f32.mxu0 0.0
    %149 = vmatmul.mubr.f32.gmra.mrb[0].mxu0 %v72
    %v150 = vpop.f32.mrb[0].mxu0
    %v151 = vadd.f32 %v77, %v150
    %v152 = vpop.f32.mrb[0].mxu0
    %v153 = vadd.f32 %v81, %v152
    %154 = vdwg.mxu0
    %v155 = vxor.u32 %v151, 2147483648
    %v156 = vmul.f32 %v155, 1.442695
    %v157 = vpow.pop %v156
    %v158 = vadd.f32 %v157, 1.0
    %v159 = vrcp.pop %v158
    %v160 = vmul.f32 1.0, %v159
    %v161 = vmul.f32 %v160, %v24
    %v163 = vsel %vm71, %v161, 0
    %165 = vmatprep.subr.mxu0 0.0
    %166 = vmatpush1.msra.mxu0 %v59
    %167 = vmatprep.subr.mxu0 0.0
    %168 = vmatpush1.msra.mxu0 %v60
    %169 = vmatprep.subr.mxu0 0.0
    %170 = vmatpush1.msra.mxu0 %v61
    %171 = vmatprep.subr.mxu0 0.0
    %172 = vmatpush1.msra.mxu0 %v62
    %173 = vmatprep.subr.mxu0 0.0
    %174 = vmatpush1.msra.mxu0 %v63
    %175 = vmatprep.subr.mxu0 0.0
    %176 = vmatpush1.msra.mxu0 %v64
    %177 = vmatprep.subr.mxu0 0.0
    %178 = vmatpush1.msra.mxu0 %v65
    %179 = vmatprep.subr.mxu0 0.0
    %180 = vmatpush1.msra.mxu0 %v66
    %181 = vmatprep.subr.mxu0 0.0
    %182 = vmatpush1.msra.mxu0 0.0
    %183 = vmatprep.subr.mxu0 0.0
    %184 = vmatpush1.msra.mxu0 0.0
    %185 = vmatprep.subr.mxu0 0.0
    %186 = vmatpush1.msra.mxu0 0.0
    %187 = vmatprep.subr.mxu0 0.0
    %188 = vmatpush1.msra.mxu0 0.0
    %189 = vmatprep.subr.mxu0 0.0
    %190 = vmatpush1.msra.mxu0 0.0
    %191 = vmatprep.subr.mxu0 0.0
    %192 = vmatpush1.msra.mxu0 0.0
    %193 = vmatprep.subr.mxu0 0.0
    %194 = vmatpush1.msra.mxu0 0.0
    %195 = vmatprep.subr.mxu0 0.0
    %196 = vmatpush1.msra.mxu0 0.0
    %197 = vmatprep.subr.mxu0 0.0
    %198 = vmatpush1.msra.mxu0 0.0
    %199 = vmatprep.subr.mxu0 0.0
    %200 = vmatpush1.msra.mxu0 0.0
    %201 = vmatprep.subr.mxu0 0.0
    %202 = vmatpush1.msra.mxu0 0.0
    %203 = vmatprep.subr.mxu0 0.0
    %204 = vmatpush1.msra.mxu0 0.0
    %205 = vmatprep.subr.mxu0 0.0
    %206 = vmatpush1.msra.mxu0 0.0
    %207 = vmatprep.subr.mxu0 0.0
    %208 = vmatpush1.msra.mxu0 0.0
    %209 = vmatprep.subr.mxu0 0.0
    %210 = vmatpush1.msra.mxu0 0.0
    %211 = vmatprep.subr.mxu0 0.0
    %212 = vmatpush1.msra.mxu0 0.0
    %213 = vmatprep.subr.mxu0 0.0
    %214 = vmatpush1.msra.mxu0 0.0
    %215 = vmatprep.subr.mxu0 0.0
    %216 = vmatpush1.msra.mxu0 0.0
    %217 = vmatprep.subr.mxu0 0.0
    %218 = vmatpush1.msra.mxu0 0.0
    %219 = vmatprep.subr.mxu0 0.0
    %220 = vmatpush1.msra.mxu0 0.0
    %221 = vmatprep.subr.mxu0 0.0
    %222 = vmatpush1.msra.mxu0 0.0
    %223 = vmatprep.subr.mxu0 0.0
    %224 = vmatpush1.msra.mxu0 0.0
    %225 = vmatprep.subr.mxu0 0.0
    %226 = vmatpush1.msra.mxu0 0.0
    %227 = vmatprep.subr.mxu0 0.0
    %228 = vmatpush1.msra.mxu0 0.0
    %229 = vmatprep.mubr.f32.mxu0 0.0
    %230 = vmatmul.mubr.f32.gmra.mrb[0].mxu0 %v163
    %v231 = vpop.f32.mrb[0].mxu0
    %v232 = vadd.f32 0.0, %v231
    %v233 = vpop.f32.mrb[0].mxu0
    %234 = vdwg.mxu0
    %v235 = vadd.f32 %v153, %v232
    %v236 = vtanh.pop %v235
    %v237 = vsub.f32 %v24, %v236
    %239 = vrot.lane.b32.xlu0 %v237, 64
    %v240 = vpop.permute.xlu0 %239
    %v242 = vmul.f32 %v160, %v240
    %244 = vrot.lane.b32.xlu0 %v242, 64
    %v245 = vpop.permute.xlu0 %244
    %v247 = vadd.f32 %v236, %v245
    %248 = vst.msk [vmem:[#allocation2] sm:$0xff] %vm71, %v247
    %249 = vst.msk [vmem:[#allocation4] sm:$0xff] %vm71, %v236
    // Predicated region
    $region22: #{gru_black_forward.1} parent=1 // pred_check
      _
    $region23: #{gru_black_forward.1} parent=1 // pred_check_branch
      %251 = sbr.rel (0) target = $region25
    $region24: #{gru_black_forward.1} parent=1 // pred_region
      %s253 = ssub.s32 128, 128
      %254 = vsyncadd [#allocation3], %s253
      %s256 = sshll.u32 [#allocation2], 4
      %s257 = int_to_ptr.vmem [resolvable:$true] %s256
      %259 = dma.vmem_to_hbm [thread:$0]  %s257, 128, %s5, [#allocation3]
    $region25: #{gru_black_forward.1} parent=1 // pred_fallthru
      _
    // Predicated region
    $region26: #{gru_black_forward.1} parent=1 // pred_check
      _
    $region27: #{gru_black_forward.1} parent=1 // pred_check_branch
      %261 = sbr.rel (0) target = $region29
    $region28: #{gru_black_forward.1} parent=1 // pred_region
      %s263 = ssub.s32 128, 128
      %264 = vsyncadd [#allocation5], %s263
      %s266 = sshll.u32 [#allocation4], 4
      %s267 = int_to_ptr.vmem [resolvable:$true] %s266
      %269 = dma.vmem_to_hbm [thread:$0]  %s267, 128, %s6, [#allocation5]
    $region29: #{gru_black_forward.1} parent=1 // pred_fallthru
      _
    // Predicated region
    $region30: #{gru_black_forward.1} parent=1 // pred_check
      _
    $region31: #{gru_black_forward.1} parent=1 // pred_check_branch
      %271 = sbr.rel (0) target = $region33
    $region32: #{gru_black_forward.1} parent=1 // pred_region
      %272 = dma.done [#allocation3], 128
    $region33: #{gru_black_forward.1} parent=1 // pred_fallthru
      _
    // Predicated region
    $region34: #{gru_black_forward.1} parent=1 // pred_check
      _
    $region35: #{gru_black_forward.1} parent=1 // pred_check_branch
      %274 = sbr.rel (0) target = $region37
    $region36: #{gru_black_forward.1} parent=1 // pred_region
      %275 = dma.done [#allocation5], 128
    $region37: #{gru_black_forward.1} parent=1 // pred_fallthru
      _
    %276 = vsyncpa [#allocation3], 1
    %277 = vsyncpa [#allocation5], 1

</llo_original>
